<compile_context>
chip_gen: v6e
topology: v6e:2x2x1
jax: 0.10.0
libtpu: 0.0.40
codegen_flags: <defaults>
</compile_context>

<pallas_src>
import functools

import jax
import jax.numpy as jnp
from jax.experimental import pallas as pl
from jax.experimental.pallas import tpu as pltpu

MARGIN = 5.0
E_CONST = 2.71828
PARAM_DIM = 62
EPS = 1e-6            # F.pairwise_distance default eps (added to the difference)


def _wpdc2_kernel(l_ref, r_ref, label_ref, part_ref, *, total_b, tb):
    i = pl.program_id(0)

    l = l_ref[...].astype(jnp.float32)          # (TB, D)
    r = r_ref[...].astype(jnp.float32)          # (TB, D)
    label = label_ref[...].astype(jnp.float32)  # (TB, 1)

    # L1 pairwise distance over the full 62-d feature axis (eps added to the
    # difference, exactly like F.pairwise_distance with p=1).
    diff = jnp.abs(l - r + EPS)
    e_w_f = jnp.sum(diff, axis=1, keepdims=True)           # (TB, 1)

    pos = label * (2.0 / MARGIN) * (e_w_f * e_w_f)
    neg = (1.0 - label) * (2.0 * MARGIN) * (E_CONST ** (-2.77 * e_w_f / MARGIN))
    per_row = pos + neg                                     # (TB, 1)

    # Mask rows past the true batch size (last, partial block). Select (not
    # multiply) so garbage / NaN in padded rows never reaches the sum.
    row = jax.lax.broadcasted_iota(jnp.int32, per_row.shape, 0)
    valid = (i * tb + row) < total_b
    block_sum = jnp.sum(jnp.where(valid, per_row, 0.0))

    # Store this block's partial sum at [0, 0] of its private (8, 128) output
    # tile (everything else exactly zero) -> unmasked lane-dense store.
    rr = jax.lax.broadcasted_iota(jnp.int32, (8, 128), 0)
    cc = jax.lax.broadcasted_iota(jnp.int32, (8, 128), 1)
    part_ref[...] = jnp.where((rr == 0) & (cc == 0), block_sum, 0.0)


def wpdc_loss_2(feature_l, feature_r, label, *, block_rows=2048):
    """feature_l, feature_r: (B, 62); label: (B,) or (B, 1) -> scalar f32 loss."""
    b, d = feature_l.shape
    label = jnp.asarray(label).reshape(b, 1)

    # Block size: multiple of 8, at most `block_rows` rows. At 2048 rows the
    # double-buffered working set is ~2 MiB, well inside every generation's
    # default scoped VMEM, while large enough to amortize per-step overhead.
    tb = min(block_rows, ((b + 7) // 8) * 8)
    num_blocks = pl.cdiv(b, tb)

    kernel = functools.partial(_wpdc2_kernel, total_b=b, tb=tb)

    partials = pl.pallas_call(
        kernel,
        out_shape=jax.ShapeDtypeStruct((8 * num_blocks, 128), jnp.float32),
        grid_spec=pltpu.PrefetchScalarGridSpec(
            num_scalar_prefetch=0,
            grid=(num_blocks,),
            in_specs=[
                pl.BlockSpec((tb, d), lambda i: (i, 0)),
                pl.BlockSpec((tb, d), lambda i: (i, 0)),
                pl.BlockSpec((tb, 1), lambda i: (i, 0)),
            ],
            out_specs=pl.BlockSpec((8, 128), lambda i: (i, 0)),
        ),
        compiler_params=pltpu.CompilerParams(
            dimension_semantics=("parallel",),
        ),
    )(feature_l, feature_r, label)

    # Tiny final reduction in JAX: all entries except the per-block [0, 0]
    # slots are exactly zero, so a plain sum gives the total.
    return jnp.sum(partials) / b


def _reference(feature_l, feature_r, label):
    # Pure-JAX reference of the PyTorch forward, for a correctness check.
    l = feature_l.astype(jnp.float32)
    r = feature_r.astype(jnp.float32)
    e = jnp.sum(jnp.abs(l - r + EPS), axis=1, keepdims=True)
    label = label.reshape(-1, 1).astype(jnp.float32)
    shp = label * (2.0 / MARGIN) * e ** 2 + (1.0 - label) * 2.0 * MARGIN * (
        E_CONST ** (-2.77 * e / MARGIN)
    )
    return jnp.mean(shp)


if __name__ == "__main__":
    key = jax.random.PRNGKey(0)
    k1, k2, k3 = jax.random.split(key, 3)
    B = 8
    feature_l = jax.random.normal(k1, (B, PARAM_DIM), dtype=jnp.float32)
    feature_r = jax.random.normal(k2, (B, PARAM_DIM), dtype=jnp.float32)
    label = jax.random.bernoulli(k3, 0.5, (B, 1)).astype(jnp.float32)

    loss = wpdc_loss_2(feature_l, feature_r, label)
    jax.block_until_ready(loss)

    ref = _reference(feature_l, feature_r, label)
    assert jnp.allclose(loss, ref, rtol=1e-5, atol=1e-5), (loss, ref)

    print("KERNEL_OK")
</pallas_src>

<mosaic_0001>
module attributes {stable_mosaic.version = 11 : i64} {
  func.func @_wpdc2_kernel(%arg0: i32, %arg1: memref<8x62xf32, #tpu.memory_space<vmem>>, %arg2: memref<8x62xf32, #tpu.memory_space<vmem>>, %arg3: memref<8x1xf32, #tpu.memory_space<vmem>>, %arg4: memref<8x128xf32, #tpu.memory_space<vmem>>) attributes {dimension_semantics = [#tpu.dimension_semantics<parallel>], iteration_bounds = array<i64: 1>, scalar_prefetch = 0 : i64, scratch_operands = 0 : i64, tpu.core_type = #tpu.core_type<tc>, window_params = [{transform_indices = @transform_0, window_bounds = array<i64: 8, 62>}, {transform_indices = @transform_1, window_bounds = array<i64: 8, 62>}, {transform_indices = @transform_2, window_bounds = array<i64: 8, 1>}, {transform_indices = @transform_3, window_bounds = array<i64: 8, 128>}]} {
    %c0 = arith.constant 0 : index
    %c0_0 = arith.constant 0 : index
    %0 = vector.load %arg1[%c0, %c0_0] : memref<8x62xf32, #tpu.memory_space<vmem>>, vector<8x62xf32>
    %c0_1 = arith.constant 0 : index
    %c0_2 = arith.constant 0 : index
    %1 = vector.load %arg2[%c0_1, %c0_2] : memref<8x62xf32, #tpu.memory_space<vmem>>, vector<8x62xf32>
    %c0_3 = arith.constant 0 : index
    %c0_4 = arith.constant 0 : index
    %2 = vector.load %arg3[%c0_3, %c0_4] : memref<8x1xf32, #tpu.memory_space<vmem>>, vector<8x1xf32>
    %3 = arith.subf %0, %1 : vector<8x62xf32>
    %cst = arith.constant 9.99999997E-7 : f32
    %4 = vector.broadcast %cst : f32 to vector<8x62xf32>
    %5 = arith.addf %3, %4 : vector<8x62xf32>
    %6 = math.absf %5 : vector<8x62xf32>
    %cst_5 = arith.constant dense<0.000000e+00> : vector<8xf32>
    %7 = vector.multi_reduction <add>, %6, %cst_5 [1] : vector<8x62xf32> to vector<8xf32>
    %8 = vector.shape_cast %7 : vector<8xf32> to vector<8x1xf32>
    %cst_6 = arith.constant 4.000000e-01 : f32
    %9 = vector.broadcast %cst_6 : f32 to vector<8x1xf32>
    %10 = arith.mulf %2, %9 : vector<8x1xf32>
    %11 = arith.mulf %8, %8 : vector<8x1xf32>
    %12 = arith.mulf %10, %11 : vector<8x1xf32>
    %cst_7 = arith.constant 1.000000e+00 : f32
    %13 = vector.broadcast %cst_7 : f32 to vector<8x1xf32>
    %14 = arith.subf %13, %2 : vector<8x1xf32>
    %cst_8 = arith.constant 1.000000e+01 : f32
    %15 = vector.broadcast %cst_8 : f32 to vector<8x1xf32>
    %16 = arith.mulf %14, %15 : vector<8x1xf32>
    %cst_9 = arith.constant -2.770000e+00 : f32
    %17 = vector.broadcast %cst_9 : f32 to vector<8x1xf32>
    %18 = arith.mulf %17, %8 : vector<8x1xf32>
    %cst_10 = arith.constant 5.000000e+00 : f32
    %19 = vector.broadcast %cst_10 : f32 to vector<8x1xf32>
    %20 = arith.divf %18, %19 : vector<8x1xf32>
    %cst_11 = arith.constant 2.718280e+00 : f32
    %21 = vector.broadcast %cst_11 : f32 to vector<8x1xf32>
    %22 = math.powf %21, %20 : vector<8x1xf32>
    %23 = arith.mulf %16, %22 : vector<8x1xf32>
    %24 = arith.addf %12, %23 : vector<8x1xf32>
    %25 = tpu.iota {dimensions = array<i32: 0>} : vector<8x1xi32>
    %c8_i32 = arith.constant 8 : i32
    %26 = arith.muli %arg0, %c8_i32 : i32
    %27 = vector.broadcast %26 : i32 to vector<8x1xi32>
    %28 = arith.addi %27, %25 : vector<8x1xi32>
    %c8_i32_12 = arith.constant 8 : i32
    %29 = vector.broadcast %c8_i32_12 : i32 to vector<8x1xi32>
    %30 = arith.cmpi slt, %28, %29 : vector<8x1xi32>
    %cst_13 = arith.constant 0.000000e+00 : f32
    %31 = vector.broadcast %cst_13 : f32 to vector<8x1xf32>
    %32 = arith.select %30, %24, %31 : vector<8x1xi1>, vector<8x1xf32>
    %33 = vector.shape_cast %32 : vector<8x1xf32> to vector<1x8x1xf32>
    %cst_14 = arith.constant dense<0.000000e+00> : vector<1xf32>
    %34 = vector.multi_reduction <add>, %33, %cst_14 [1, 2] : vector<1x8x1xf32> to vector<1xf32>
    %35 = vector.shape_cast %34 : vector<1xf32> to vector<1x1x1xf32>
    %36 = vector.extract %35[0, 0, 0] : f32 from vector<1x1x1xf32>
    %37 = tpu.iota {dimensions = array<i32: 0>} : vector<8x128xi32>
    %38 = tpu.iota {dimensions = array<i32: 1>} : vector<8x128xi32>
    %c0_i32 = arith.constant 0 : i32
    %39 = vector.broadcast %c0_i32 : i32 to vector<8x128xi32>
    %40 = arith.cmpi eq, %37, %39 : vector<8x128xi32>
    %c0_i32_15 = arith.constant 0 : i32
    %41 = vector.broadcast %c0_i32_15 : i32 to vector<8x128xi32>
    %42 = arith.cmpi eq, %38, %41 : vector<8x128xi32>
    %43 = arith.andi %40, %42 : vector<8x128xi1>
    %cst_16 = arith.constant 0.000000e+00 : f32
    %44 = vector.broadcast %36 : f32 to vector<8x128xf32>
    %45 = vector.broadcast %cst_16 : f32 to vector<8x128xf32>
    %46 = arith.select %43, %44, %45 : vector<8x128xi1>, vector<8x128xf32>
    %c0_17 = arith.constant 0 : index
    %c0_18 = arith.constant 0 : index
    %47 = vector.load %arg4[%c0_17, %c0_18] : memref<8x128xf32, #tpu.memory_space<vmem>>, vector<8x128xf32>
    tpu.vector_store %arg4[%c0_17, %c0_18], %46 {strides = array<i32>} : memref<8x128xf32, #tpu.memory_space<vmem>>, vector<8x128xf32>,
    return
  }
  func.func @transform_0(%arg0: i32) -> (i32, i32) {
    %c0_i32 = arith.constant 0 : i32
    %c0_i32_0 = arith.constant 0 : i32
    return %arg0, %c0_i32 : i32, i32
  }
  func.func @transform_1(%arg0: i32) -> (i32, i32) {
    %c0_i32 = arith.constant 0 : i32
    %c0_i32_0 = arith.constant 0 : i32
    return %arg0, %c0_i32 : i32, i32
  }
  func.func @transform_2(%arg0: i32) -> (i32, i32) {
    %c0_i32 = arith.constant 0 : i32
    %c0_i32_0 = arith.constant 0 : i32
    return %arg0, %c0_i32 : i32, i32
  }
  func.func @transform_3(%arg0: i32) -> (i32, i32) {
    %c0_i32 = arith.constant 0 : i32
    %c0_i32_0 = arith.constant 0 : i32
    return %arg0, %c0_i32 : i32, i32
  }
}

</mosaic_0001>

<llo_original>
// kernel: tpu_custom_call.1
$region0: #{tpu_custom_call.1}
  #allocation0 [shape = 'u32[]', space=smem, size = 0x4, offset = 0x4, fixed_abs, tag = 'smem constant byte address 0x4 - core index']
  #allocation1 [shape = 'u32[144,128]{1,0:T(1,128)}', space=vmem, size = 0x12000, scoped, tag = 'internal scratch']
  %s0 = inlined_call_operand.vmem [shape: f32[8,62], index: 0, kind: input, shape index: {}]
  %s1 = inlined_call_operand.hbm [shape: f32[8,62], index: 1, kind: input, shape index: {}]
  %s2 = inlined_call_operand.vmem [shape: f32[8,1], index: 2, kind: input, shape index: {}]
  %s3 = inlined_call_operand.hbm [shape: f32[8,128], index: 3, kind: output, shape index: {}]
  %s4 = sld [smem:[#allocation0]]
  $region26: #{tpu_custom_call.1} parent=0
    _
  %s6 = ssub.s32 1, %s4
  %s7 = scalar_select 0, %s6, %s4
  $region1: #{tpu_custom_call.1} parent=0
    #allocation2 [shape = 'u8[4096]{0}', space=vmem, size = 0x1000, scoped, tag = 'input window, operand 1, single buffered']
    #allocation3 [shape = 's32[1]{0}', space=sflag, size = 0x4, scoped, tag = 'scoped memory for tpu_custom_call.1']
    #allocation4 [shape = 's32[1]{0}', space=sflag, size = 0x4, scoped, tag = 'scoped memory for tpu_custom_call.1']
    #allocation5 [shape = 'u8[4096]{0}', space=vmem, size = 0x1000, scoped, tag = 'output window, operand 0, single buffered']
    %8 = vsyncpa [#allocation3], 0
    %9 = vsyncpa [#allocation4], 0
    // Predicated region
    $region2: #{tpu_custom_call.1} parent=1 // pred_check
      _
    $region3: #{tpu_custom_call.1} parent=1 // pred_check_branch
      %11 = sbr.rel (0) target = $region5
    $region4: #{tpu_custom_call.1} parent=1 // pred_region
      _
    $region5: #{tpu_custom_call.1} parent=1 // pred_fallthru
      _
    // Predicated region
    $region6: #{tpu_custom_call.1} parent=1 // pred_check
      _
    $region7: #{tpu_custom_call.1} parent=1 // pred_check_branch
      %13 = sbr.rel (0) target = $region9
    $region8: #{tpu_custom_call.1} parent=1 // pred_region
      %s15 = ssub.s32 128, 128
      %16 = vsyncadd [#allocation3], %s15
      %s18 = sshll.u32 [#allocation2], 4
      %s19 = int_to_ptr.vmem [resolvable:$true] %s18
      %21 = dma.hbm_to_vmem [thread:$0]  %s1, 128, %s19, [#allocation3]
    $region9: #{tpu_custom_call.1} parent=1 // pred_fallthru
      _
    // Predicated region
    $region10: #{tpu_custom_call.1} parent=1 // pred_check
      _
    $region11: #{tpu_custom_call.1} parent=1 // pred_check_branch
      %23 = sbr.rel (0) target = $region13
    $region12: #{tpu_custom_call.1} parent=1 // pred_region
      _
    $region13: #{tpu_custom_call.1} parent=1 // pred_fallthru
      _
    // Predicated region
    $region14: #{tpu_custom_call.1} parent=1 // pred_check
      _
    $region15: #{tpu_custom_call.1} parent=1 // pred_check_branch
      %25 = sbr.rel (0) target = $region17
    $region16: #{tpu_custom_call.1} parent=1 // pred_region
      %26 = dma.done [#allocation3], 128
    $region17: #{tpu_custom_call.1} parent=1 // pred_fallthru
      _
    %v27 = vld [vmem:[%s0] sm:$0xff]
    %v28 = vld [vmem:[#allocation2] sm:$0xff]
    %v29 = vld [vmem:[%s2] sm:$0xff]
    %v30 = vsub.f32 %v27, %v28
    %v31 = vadd.f32 %v30, 1e-06
    %v32 = vand.u32 2147483647, %v31
    %vm33 = vcmask 506880
    %v34 = vsel %vm33, %v32, 0.0
    %35 = vadd.xlane.f32.xlu0 %v34
    %v36 = vpop.xlane.xlu0 %35
    %v37 = vmul.f32 %v29, 0.4
    %v38 = vmul.f32 %v36, %v36
    %v39 = vmul.f32 %v37, %v38
    %v40 = vsub.f32 1.0, %v29
    %v41 = vmul.f32 %v40, 10.0
    %v42 = vmul.f32 %v36, -2.77
    %v43 = vrcp.pop 5.0
    %v44 = vmul.f32 %v42, %v43
    %v45 = vpow.f32 2.71828, %v44
    %v46 = vmul.f32 %v41, %v45
    %v47 = vadd.f32 %v39, %v46
    %v48 = vlaneseq
    %v49 = vshrl.u32 %v48, 7
    %s50 = smul.u32 0, 8
    %v51 = vstv %s50
    %v52 = vadd.s32 %v51, %v49
    %vm53 = vcmp.lt.s32.totalorder %v52, 8
    %v54 = vsel %vm53, %v47, 0.0
    %vm55 = vcmask 7168
    %v56 = vsel %vm55, %v54, 0.0
    %57 = vadd.xlane.f32.xlu0 %v56
    %v58 = vpop.xlane.xlu0 %57
    %v59 = vrot.slane %v58, 4
    %v60 = vadd.f32 %v58, %v59
    %v61 = vrot.slane %v60, 2
    %v62 = vadd.f32 %v60, %v61
    %v63 = vrot.slane %v62, 1
    %v64 = vadd.f32 %v62, %v63
    %s65 = vtos %v64
    %v66 = vlaneseq
    %v67 = vand.u32 %v66, 127
    %vm68 = vcmp.eq.s32.totalorder %v49, 0
    %vm69 = vcmp.eq.s32.totalorder %v67, 0
    %vm70 = vmand %vm68, %vm69
    %v71 = vstv %s65
    %v72 = vsel %vm70, %v71, 0.0
    %73 = vst [vmem:[#allocation5] sm:$0xff] %v72
    // Predicated region
    $region18: #{tpu_custom_call.1} parent=1 // pred_check
      _
    $region19: #{tpu_custom_call.1} parent=1 // pred_check_branch
      %75 = sbr.rel (0) target = $region21
    $region20: #{tpu_custom_call.1} parent=1 // pred_region
      %s77 = ssub.s32 128, 128
      %78 = vsyncadd [#allocation4], %s77
      %s80 = sshll.u32 [#allocation5], 4
      %s81 = int_to_ptr.vmem [resolvable:$true] %s80
      %83 = dma.vmem_to_hbm [thread:$0]  %s81, 128, %s3, [#allocation4]
    $region21: #{tpu_custom_call.1} parent=1 // pred_fallthru
      _
    // Predicated region
    $region22: #{tpu_custom_call.1} parent=1 // pred_check
      _
    $region23: #{tpu_custom_call.1} parent=1 // pred_check_branch
      %85 = sbr.rel (0) target = $region25
    $region24: #{tpu_custom_call.1} parent=1 // pred_region
      %86 = dma.done [#allocation4], 128
    $region25: #{tpu_custom_call.1} parent=1 // pred_fallthru
      _
    %87 = vsyncpa [#allocation3], 1
    %88 = vsyncpa [#allocation4], 1

</llo_original>
